<compile_context>
chip_gen: v6e
topology: v6e:2x2x1
jax: 0.10.0
libtpu: 0.0.40
codegen_flags: <defaults>
</compile_context>

<pallas_src>
import functools

import jax
import jax.numpy as jnp
from jax import lax
from jax.experimental import pallas as pl
from jax.experimental.pallas import tpu as pltpu

_LANE = 128
_SUBLANE_BF16 = 16


def _round_up(n, m):
    return (n + m - 1) // m * m


# ----------------------------- kernel ----------------------------------------

def _fused_maxout_kernel(x_ref, w_in_ref, b_in_ref, *rest, k, hp, n_hidden):
    """Whole MaxoutNN forward for one batch tile.

    x_ref:     (tb, d_in_p)          bf16
    w_in_ref:  (d_in_p, k*hp)        bf16   (k sub-linears packed along lanes)
    b_in_ref:  (1, k*hp)             f32
    [w_hid_ref:(n_h, hp, k*hp)       bf16   (stacked hidden layers, if any)]
    [b_hid_ref:(n_h, 1, k*hp)        f32 ]
    w_out_ref: (hp, d_out_p)         bf16
    b_out_ref: (1, d_out_p)          f32
    o_ref:     (tb, d_out_p)         f32
    """
    if n_hidden > 0:
        w_hid_ref, b_hid_ref, w_out_ref, b_out_ref, o_ref = rest
    else:
        w_out_ref, b_out_ref, o_ref = rest

    def maxout(h, w, b):
        # One dense MXU matmul producing all k candidate outputs at once,
        # then a max over lane-aligned hp-wide slices (hp is a 128-multiple).
        y = jnp.dot(h.astype(jnp.bfloat16), w,
                    preferred_element_type=jnp.float32) + b
        m = y[:, 0:hp]
        for j in range(1, k):
            m = jnp.maximum(m, y[:, j * hp:(j + 1) * hp])
        return m

    h = maxout(x_ref[...], w_in_ref[...], b_in_ref[...])

    if n_hidden > 0:
        if n_hidden <= 4:
            # Shallow: static unroll (full LLO scheduling freedom).
            for l in range(n_hidden):
                h = maxout(h, w_hid_ref[l], b_hid_ref[l])
        else:
            # Deep: visible loop keeps only one layer's temporaries live.
            h = lax.fori_loop(
                0, n_hidden,
                lambda l, hh: maxout(hh, w_hid_ref[l], b_hid_ref[l]),
                h, unroll=False)

    out = jnp.dot(h.astype(jnp.bfloat16), w_out_ref[...],
                  preferred_element_type=jnp.float32) + b_out_ref[...]
    o_ref[...] = out.astype(o_ref.dtype)


# ----------------------------- packing ---------------------------------------

def pack_params(params, *, lane=_LANE):
    """Pack/pad PyTorch-style params into the fused, lane-dense layout.

    Weights -> bf16 (MXU inputs), biases -> f32. Padded rows/columns are zero,
    so padded hidden activations are exactly 0 and never influence real
    outputs (their downstream weight rows are zero as well).
    """
    k, d_in, d_hid = params["w_in"].shape
    d_out = params["w_out"].shape[1]
    d_in_p = _round_up(d_in, lane)
    hp = _round_up(d_hid, lane)
    d_out_p = _round_up(d_out, lane)
    n_hidden = len(params["w_hid"])

    def pack_w(w, rows_p, cols_p):  # [k, rin, rout] -> [rows_p, k*cols_p] bf16
        kk, rin, rout = w.shape
        wp = jnp.zeros((kk, rows_p, cols_p), jnp.float32).at[:, :rin, :rout].set(w)
        return jnp.transpose(wp, (1, 0, 2)).reshape(rows_p, kk * cols_p) \
                  .astype(jnp.bfloat16)

    def pack_b(b, cols_p):          # [k, rout] -> [1, k*cols_p] f32
        kk, rout = b.shape
        bp = jnp.zeros((kk, cols_p), jnp.float32).at[:, :rout].set(b)
        return bp.reshape(1, kk * cols_p)

    packed = {
        "w_in": pack_w(params["w_in"], d_in_p, hp),
        "b_in": pack_b(params["b_in"], hp),
        "w_out": jnp.zeros((hp, d_out_p), jnp.float32)
                   .at[:d_hid, :d_out].set(params["w_out"]).astype(jnp.bfloat16),
        "b_out": jnp.zeros((1, d_out_p), jnp.float32)
                   .at[0, :d_out].set(params["b_out"]),
    }
    if n_hidden > 0:
        packed["w_hid"] = jnp.stack([pack_w(w, hp, hp) for w in params["w_hid"]])
        packed["b_hid"] = jnp.stack([pack_b(b, hp) for b in params["b_hid"]])
    # n_hidden == 0: no dummy operands — they are simply not passed/DMA'd.

    cfg = dict(k=k, d_in=d_in, d_in_p=d_in_p, d_hid_p=hp, d_out=d_out,
               d_out_p=d_out_p, n_hidden=n_hidden)
    return packed, cfg


# ----------------------------- wrapper ----------------------------------------

def _batch_tile(B):
    """Batch tile: 16-aligned (bf16 sublanes), 128-aligned once B>=128,
    >=2 grid steps for moderate B (v7x megacore), up to 512 rows for large B."""
    if B <= 32:
        return _round_up(max(B, 1), _SUBLANE_BF16)
    if B <= 512:
        align = _LANE if B >= 128 else _SUBLANE_BF16
        return _round_up(-(-B // 2), align)
    return 512


def maxout_forward_pallas(packed, x, *, k, d_in, d_in_p, d_hid_p, d_out,
                          d_out_p, n_hidden, out_dtype=jnp.float32):
    """x: [B, d_in] f32 -> [B, d_out] out_dtype, whole network in one pallas_call."""
    B = x.shape[0]
    hp = d_hid_p

    tb = _batch_tile(B)
    bp = _round_up(B, tb)

    # bf16 streaming input, zero-padded to (bp, d_in_p) in one fused op
    # (cast is needed anyway, so the pad is essentially free).
    # TODO(synk): for very large B, mask the ragged last tile in-kernel instead
    # of materializing a padded copy of x here.
    xb = x.astype(jnp.bfloat16)
    if bp != B or d_in_p != d_in:
        xb = jnp.pad(xb, ((0, bp - B), (0, d_in_p - d_in)))

    # VMEM budget: single-buffered resident weights + double-buffered x/out
    # tiles + f32 temporaries (the (tb, k*hp) y and (tb, hp) h), ~50% headroom.
    weights_b = (d_in_p * k * hp * 2 + k * hp * 4
                 + n_hidden * (hp * k * hp * 2 + k * hp * 4)
                 + hp * d_out_p * 2 + d_out_p * 4)
    stream_b = 2 * tb * d_in_p * 2 + 2 * tb * d_out_p * 4
    temp_b = tb * k * hp * 4 + tb * hp * 4
    vmem_limit = int(1.5 * (weights_b + stream_b + temp_b)) + (1 << 20)
    vmem_limit = min(max(vmem_limit, 16 << 20), 64 << 20)

    resident = dict(pipeline_mode=pl.Buffered(1))  # constant index -> 1 buffer

    in_specs = [
        pl.BlockSpec((tb, d_in_p), lambda i: (i, 0)),                   # x tile
        pl.BlockSpec((d_in_p, k * hp), lambda i: (0, 0), **resident),   # w_in
        pl.BlockSpec((1, k * hp), lambda i: (0, 0), **resident),        # b_in
    ]
    operands = [xb, packed["w_in"], packed["b_in"]]
    if n_hidden > 0:
        n_h = packed["w_hid"].shape[0]
        in_specs += [
            pl.BlockSpec((n_h, hp, k * hp), lambda i: (0, 0, 0), **resident),
            pl.BlockSpec((n_h, 1, k * hp), lambda i: (0, 0, 0), **resident),
        ]
        operands += [packed["w_hid"], packed["b_hid"]]
    in_specs += [
        pl.BlockSpec((hp, d_out_p), lambda i: (0, 0), **resident),      # w_out
        pl.BlockSpec((1, d_out_p), lambda i: (0, 0), **resident),       # b_out
    ]
    operands += [packed["w_out"], packed["b_out"]]

    kernel = functools.partial(_fused_maxout_kernel, k=k, hp=hp,
                               n_hidden=n_hidden)

    out = pl.pallas_call(
        kernel,
        out_shape=jax.ShapeDtypeStruct((bp, d_out_p), out_dtype),
        grid_spec=pltpu.PrefetchScalarGridSpec(
            num_scalar_prefetch=0,
            grid=(bp // tb,),
            in_specs=in_specs,
            out_specs=pl.BlockSpec((tb, d_out_p), lambda i: (i, 0)),
        ),
        compiler_params=pltpu.CompilerParams(
            dimension_semantics=("parallel",),
            vmem_limit_bytes=vmem_limit),
    )(*operands)

    return out[:B, :d_out]


# ----------------------------- model setup / reference ------------------------

def init_params(key, d_in, d_hid, d_out, k, n_layer):
    """PyTorch-style uniform(+-1/sqrt(fan_in)) params; weights stored [.., in, out]."""
    params = {}
    key, k1, k2 = jax.random.split(key, 3)
    s = 1.0 / jnp.sqrt(d_in)
    params["w_in"] = jax.random.uniform(k1, (k, d_in, d_hid), jnp.float32, -s, s)
    params["b_in"] = jax.random.uniform(k2, (k, d_hid), jnp.float32, -s, s)

    params["w_hid"], params["b_hid"] = [], []
    s = 1.0 / jnp.sqrt(d_hid)
    for _ in range(n_layer - 1):
        key, k1, k2 = jax.random.split(key, 3)
        params["w_hid"].append(
            jax.random.uniform(k1, (k, d_hid, d_hid), jnp.float32, -s, s))
        params["b_hid"].append(
            jax.random.uniform(k2, (k, d_hid), jnp.float32, -s, s))

    key, k1, k2 = jax.random.split(key, 3)
    params["w_out"] = jax.random.uniform(k1, (d_hid, d_out), jnp.float32, -s, s)
    params["b_out"] = jax.random.uniform(k2, (d_out,), jnp.float32, -s, s)
    return params


def maxout_nn_reference(params, x, matmul_dtype=jnp.float32):
    """Pure-JAX reference mirroring the PyTorch forward.

    matmul_dtype=bf16 gives a precision-matched reference for the kernel
    (bf16 MXU inputs, f32 accumulation, f32 bias/max).
    """
    def mm(a, w):
        return jnp.dot(a.astype(matmul_dtype), w.astype(matmul_dtype),
                       preferred_element_type=jnp.float32)

    def maxout(h, w, b):
        ys = [mm(h, w[j]) + b[j][None, :] for j in range(w.shape[0])]
        return functools.reduce(jnp.maximum, ys)

    h = maxout(x, params["w_in"], params["b_in"])
    for w, b in zip(params["w_hid"], params["b_hid"]):
        h = maxout(h, w, b)
    return mm(h, params["w_out"]) + params["b_out"][None, :]


# ----------------------------- main --------------------------------------------

if __name__ == "__main__":
    B, d_in, d_hid, d_out, k, n_layer = 8, 32, 64, 16, 3, 3

    key = jax.random.PRNGKey(0)
    key_p, key_x = jax.random.split(key)
    params = init_params(key_p, d_in, d_hid, d_out, k, n_layer)
    x = jax.random.normal(key_x, (B, d_in), jnp.float32)

    packed, cfg = pack_params(params)
    fwd = jax.jit(functools.partial(maxout_forward_pallas, **cfg))

    out = jax.block_until_ready(fwd(packed, x))

    ref_matched = maxout_nn_reference(params, x, matmul_dtype=jnp.bfloat16)
    ref_f32 = maxout_nn_reference(params, x, matmul_dtype=jnp.float32)

    assert out.shape == (B, d_out), out.shape
    # Precision-matched check vs. a reference with the same bf16-MXU / f32-acc path.
    assert jnp.allclose(out, ref_matched, atol=1e-3, rtol=1e-3), (
        float(jnp.max(jnp.abs(out - ref_matched))))
    # Loose check vs. the full-f32 PyTorch-equivalent forward.
    assert jnp.allclose(out, ref_f32, atol=1e-1, rtol=1e-1), (
        float(jnp.max(jnp.abs(out - ref_f32))))

    print("KERNEL_OK")
</pallas_src>

<mosaic_0001>
module attributes {stable_mosaic.version = 11 : i64} {
  func.func @_fused_maxout_kernel(%arg0: i32, %arg1: memref<16x128xbf16, #tpu.memory_space<vmem>>, %arg2: memref<128x384xbf16, #tpu.memory_space<vmem>>, %arg3: memref<1x384xf32, #tpu.memory_space<vmem>>, %arg4: memref<2x128x384xbf16, #tpu.memory_space<vmem>>, %arg5: memref<2x1x384xf32, #tpu.memory_space<vmem>>, %arg6: memref<128x128xbf16, #tpu.memory_space<vmem>>, %arg7: memref<1x128xf32, #tpu.memory_space<vmem>>, %arg8: memref<16x128xf32, #tpu.memory_space<vmem>>) attributes {dimension_semantics = [#tpu.dimension_semantics<parallel>], iteration_bounds = array<i64: 1>, scalar_prefetch = 0 : i64, scratch_operands = 0 : i64, tpu.core_type = #tpu.core_type<tc>, window_params = [{transform_indices = @transform_0, window_bounds = array<i64: 16, 128>}, {pipeline_mode = #tpu.pipeline_mode<synchronous>, transform_indices = @transform_1, window_bounds = array<i64: 128, 384>}, {pipeline_mode = #tpu.pipeline_mode<synchronous>, transform_indices = @transform_2, window_bounds = array<i64: 1, 384>}, {pipeline_mode = #tpu.pipeline_mode<synchronous>, transform_indices = @transform_3, window_bounds = array<i64: 2, 128, 384>}, {pipeline_mode = #tpu.pipeline_mode<synchronous>, transform_indices = @transform_4, window_bounds = array<i64: 2, 1, 384>}, {pipeline_mode = #tpu.pipeline_mode<synchronous>, transform_indices = @transform_5, window_bounds = array<i64: 128, 128>}, {pipeline_mode = #tpu.pipeline_mode<synchronous>, transform_indices = @transform_6, window_bounds = array<i64: 1, 128>}, {transform_indices = @transform_7, window_bounds = array<i64: 16, 128>}]} {
    %c0 = arith.constant 0 : index
    %c0_0 = arith.constant 0 : index
    %0 = vector.load %arg1[%c0, %c0_0] : memref<16x128xbf16, #tpu.memory_space<vmem>>, vector<16x128xbf16>
    %c0_1 = arith.constant 0 : index
    %c0_2 = arith.constant 0 : index
    %1 = vector.load %arg2[%c0_1, %c0_2] : memref<128x384xbf16, #tpu.memory_space<vmem>>, vector<128x384xbf16>
    %c0_3 = arith.constant 0 : index
    %c0_4 = arith.constant 0 : index
    %2 = vector.load %arg3[%c0_3, %c0_4] : memref<1x384xf32, #tpu.memory_space<vmem>>, vector<1x384xf32>
    %cst = arith.constant dense<0.000000e+00> : vector<16x384xf32>
    %3 = tpu.matmul %0, %1, %cst {dimension_numbers = #tpu.dot_dimension_numbers<[1], [0], [0], [1], [0, 0, 1, 1], [], []>} : vector<16x128xbf16>, vector<128x384xbf16>, vector<16x384xf32> -> vector<16x384xf32>
    %4 = vector.broadcast %2 : vector<1x384xf32> to vector<16x384xf32>
    %5 = arith.addf %3, %4 : vector<16x384xf32>
    %6 = vector.extract_strided_slice %5 {offsets = [0, 0], sizes = [16, 128], strides = [1, 1]} : vector<16x384xf32> to vector<16x128xf32>
    %7 = vector.extract_strided_slice %5 {offsets = [0, 128], sizes = [16, 128], strides = [1, 1]} : vector<16x384xf32> to vector<16x128xf32>
    %8 = arith.maximumf %6, %7 : vector<16x128xf32>
    %9 = vector.extract_strided_slice %5 {offsets = [0, 256], sizes = [16, 128], strides = [1, 1]} : vector<16x384xf32> to vector<16x128xf32>
    %10 = arith.maximumf %8, %9 : vector<16x128xf32>
    %c0_5 = arith.constant 0 : index
    %c0_6 = arith.constant 0 : index
    %c0_7 = arith.constant 0 : index
    %11 = vector.load %arg4[%c0_5, %c0_6, %c0_7] : memref<2x128x384xbf16, #tpu.memory_space<vmem>>, vector<1x128x384xbf16>
    %12 = vector.shape_cast %11 : vector<1x128x384xbf16> to vector<128x384xbf16>
    %c0_8 = arith.constant 0 : index
    %c0_9 = arith.constant 0 : index
    %c0_10 = arith.constant 0 : index
    %13 = vector.load %arg5[%c0_8, %c0_9, %c0_10] : memref<2x1x384xf32, #tpu.memory_space<vmem>>, vector<1x1x384xf32>
    %14 = vector.shape_cast %13 : vector<1x1x384xf32> to vector<1x384xf32>
    %15 = arith.truncf %10 : vector<16x128xf32> to vector<16x128xbf16>
    %cst_11 = arith.constant dense<0.000000e+00> : vector<16x384xf32>
    %16 = tpu.matmul %15, %12, %cst_11 {dimension_numbers = #tpu.dot_dimension_numbers<[1], [0], [0], [1], [0, 0, 1, 1], [], []>} : vector<16x128xbf16>, vector<128x384xbf16>, vector<16x384xf32> -> vector<16x384xf32>
    %17 = vector.broadcast %14 : vector<1x384xf32> to vector<16x384xf32>
    %18 = arith.addf %16, %17 : vector<16x384xf32>
    %19 = vector.extract_strided_slice %18 {offsets = [0, 0], sizes = [16, 128], strides = [1, 1]} : vector<16x384xf32> to vector<16x128xf32>
    %20 = vector.extract_strided_slice %18 {offsets = [0, 128], sizes = [16, 128], strides = [1, 1]} : vector<16x384xf32> to vector<16x128xf32>
    %21 = arith.maximumf %19, %20 : vector<16x128xf32>
    %22 = vector.extract_strided_slice %18 {offsets = [0, 256], sizes = [16, 128], strides = [1, 1]} : vector<16x384xf32> to vector<16x128xf32>
    %23 = arith.maximumf %21, %22 : vector<16x128xf32>
    %c1 = arith.constant 1 : index
    %c0_12 = arith.constant 0 : index
    %c0_13 = arith.constant 0 : index
    %24 = vector.load %arg4[%c1, %c0_12, %c0_13] : memref<2x128x384xbf16, #tpu.memory_space<vmem>>, vector<1x128x384xbf16>
    %25 = vector.shape_cast %24 : vector<1x128x384xbf16> to vector<128x384xbf16>
    %c1_14 = arith.constant 1 : index
    %c0_15 = arith.constant 0 : index
    %c0_16 = arith.constant 0 : index
    %26 = vector.load %arg5[%c1_14, %c0_15, %c0_16] : memref<2x1x384xf32, #tpu.memory_space<vmem>>, vector<1x1x384xf32>
    %27 = vector.shape_cast %26 : vector<1x1x384xf32> to vector<1x384xf32>
    %28 = arith.truncf %23 : vector<16x128xf32> to vector<16x128xbf16>
    %cst_17 = arith.constant dense<0.000000e+00> : vector<16x384xf32>
    %29 = tpu.matmul %28, %25, %cst_17 {dimension_numbers = #tpu.dot_dimension_numbers<[1], [0], [0], [1], [0, 0, 1, 1], [], []>} : vector<16x128xbf16>, vector<128x384xbf16>, vector<16x384xf32> -> vector<16x384xf32>
    %30 = vector.broadcast %27 : vector<1x384xf32> to vector<16x384xf32>
    %31 = arith.addf %29, %30 : vector<16x384xf32>
    %32 = vector.extract_strided_slice %31 {offsets = [0, 0], sizes = [16, 128], strides = [1, 1]} : vector<16x384xf32> to vector<16x128xf32>
    %33 = vector.extract_strided_slice %31 {offsets = [0, 128], sizes = [16, 128], strides = [1, 1]} : vector<16x384xf32> to vector<16x128xf32>
    %34 = arith.maximumf %32, %33 : vector<16x128xf32>
    %35 = vector.extract_strided_slice %31 {offsets = [0, 256], sizes = [16, 128], strides = [1, 1]} : vector<16x384xf32> to vector<16x128xf32>
    %36 = arith.maximumf %34, %35 : vector<16x128xf32>
    %37 = arith.truncf %36 : vector<16x128xf32> to vector<16x128xbf16>
    %c0_18 = arith.constant 0 : index
    %c0_19 = arith.constant 0 : index
    %38 = vector.load %arg6[%c0_18, %c0_19] : memref<128x128xbf16, #tpu.memory_space<vmem>>, vector<128x128xbf16>
    %cst_20 = arith.constant dense<0.000000e+00> : vector<16x128xf32>
    %39 = tpu.matmul %37, %38, %cst_20 {dimension_numbers = #tpu.dot_dimension_numbers<[1], [0], [0], [1], [0, 0, 1, 1], [], []>} : vector<16x128xbf16>, vector<128x128xbf16>, vector<16x128xf32> -> vector<16x128xf32>
    %c0_21 = arith.constant 0 : index
    %c0_22 = arith.constant 0 : index
    %40 = vector.load %arg7[%c0_21, %c0_22] : memref<1x128xf32, #tpu.memory_space<vmem>>, vector<1x128xf32>
    %41 = vector.broadcast %40 : vector<1x128xf32> to vector<16x128xf32>
    %42 = arith.addf %39, %41 : vector<16x128xf32>
    %c0_23 = arith.constant 0 : index
    %c0_24 = arith.constant 0 : index
    %43 = vector.load %arg8[%c0_23, %c0_24] : memref<16x128xf32, #tpu.memory_space<vmem>>, vector<16x128xf32>
    tpu.vector_store %arg8[%c0_23, %c0_24], %42 {strides = array<i32>} : memref<16x128xf32, #tpu.memory_space<vmem>>, vector<16x128xf32>,
    return
  }
  func.func @transform_0(%arg0: i32) -> (i32, i32) {
    %c0_i32 = arith.constant 0 : i32
    %c0_i32_0 = arith.constant 0 : i32
    return %arg0, %c0_i32 : i32, i32
  }
  func.func @transform_1(%arg0: i32) -> (i32, i32) {
    %c0_i32 = arith.constant 0 : i32
    %c0_i32_0 = arith.constant 0 : i32
    %c0_i32_1 = arith.constant 0 : i32
    return %c0_i32, %c0_i32_0 : i32, i32
  }
  func.func @transform_2(%arg0: i32) -> (i32, i32) {
    %c0_i32 = arith.constant 0 : i32
    %c0_i32_0 = arith.constant 0 : i32
    %c0_i32_1 = arith.constant 0 : i32
    return %c0_i32, %c0_i32_0 : i32, i32
  }
  func.func @transform_3(%arg0: i32) -> (i32, i32, i32) {
    %c0_i32 = arith.constant 0 : i32
    %c0_i32_0 = arith.constant 0 : i32
    %c0_i32_1 = arith.constant 0 : i32
    %c0_i32_2 = arith.constant 0 : i32
    return %c0_i32, %c0_i32_0, %c0_i32_1 : i32, i32, i32
  }
  func.func @transform_4(%arg0: i32) -> (i32, i32, i32) {
    %c0_i32 = arith.constant 0 : i32
    %c0_i32_0 = arith.constant 0 : i32
    %c0_i32_1 = arith.constant 0 : i32
    %c0_i32_2 = arith.constant 0 : i32
    return %c0_i32, %c0_i32_0, %c0_i32_1 : i32, i32, i32
  }
  func.func @transform_5(%arg0: i32) -> (i32, i32) {
    %c0_i32 = arith.constant 0 : i32
    %c0_i32_0 = arith.constant 0 : i32
    %c0_i32_1 = arith.constant 0 : i32
    return %c0_i32, %c0_i32_0 : i32, i32
  }
  func.func @transform_6(%arg0: i32) -> (i32, i32) {
    %c0_i32 = arith.constant 0 : i32
    %c0_i32_0 = arith.constant 0 : i32
    %c0_i32_1 = arith.constant 0 : i32
    return %c0_i32, %c0_i32_0 : i32, i32
  }
  func.func @transform_7(%arg0: i32) -> (i32, i32) {
    %c0_i32 = arith.constant 0 : i32
    %c0_i32_0 = arith.constant 0 : i32
    return %arg0, %c0_i32 : i32, i32
  }
}

</mosaic_0001>

<llo_original>
// kernel: maxout_forward_pallas.1
$region0: #{maxout_forward_pallas.1}
  #allocation0 [shape = 'u32[]', space=smem, size = 0x4, offset = 0x4, fixed_abs, tag = 'smem constant byte address 0x4 - core index']
  #allocation1 [shape = 'u32[144,128]{1,0:T(1,128)}', space=vmem, size = 0x12000, scoped, tag = 'internal scratch']
  %s0 = inlined_call_operand.vmem [shape: bf16[16,128], index: 0, kind: input, shape index: {}]
  %s1 = inlined_call_operand.hbm [shape: bf16[128,384], index: 1, kind: input, shape index: {}]
  %s2 = inlined_call_operand.vmem [shape: f32[1,384], index: 2, kind: input, shape index: {}]
  %s3 = inlined_call_operand.hbm [shape: bf16[2,128,384], index: 3, kind: input, shape index: {}]
  %s4 = inlined_call_operand.vmem [shape: f32[2,1,384], index: 4, kind: input, shape index: {}]
  %s5 = inlined_call_operand.hbm [shape: bf16[128,128], index: 5, kind: input, shape index: {}]
  %s6 = inlined_call_operand.vmem [shape: f32[1,128], index: 6, kind: input, shape index: {}]
  %s7 = inlined_call_operand.vmem [shape: f32[16,128], index: 7, kind: output, shape index: {}]
  %s8 = sld [smem:[#allocation0]]
  $region50: #{maxout_forward_pallas.1} parent=0
    _
  %s10 = ssub.s32 1, %s8
  %s11 = scalar_select 0, %s10, %s8
  $region1: #{maxout_forward_pallas.1} parent=0
    #allocation2 [shape = 'u8[98304]{0}', space=vmem, size = 0x18000, scoped, tag = 'input window, operand 1, single buffered']
    #allocation3 [shape = 's32[1]{0}', space=sflag, size = 0x4, scoped, tag = 'scoped memory for maxout_forward_pallas.1']
    #allocation4 [shape = 'u8[196608]{0}', space=vmem, size = 0x30000, scoped, tag = 'input window, operand 3, single buffered']
    #allocation5 [shape = 's32[1]{0}', space=sflag, size = 0x4, scoped, tag = 'scoped memory for maxout_forward_pallas.1']
    #allocation6 [shape = 'u8[32768]{0}', space=vmem, size = 0x8000, scoped, tag = 'input window, operand 5, single buffered']
    %12 = vsyncpa [#allocation3], 0
    %13 = vsyncpa [#allocation5], 0
    // Predicated region
    $region2: #{maxout_forward_pallas.1} parent=1 // pred_check
      _
    $region3: #{maxout_forward_pallas.1} parent=1 // pred_check_branch
      %15 = sbr.rel (0) target = $region5
    $region4: #{maxout_forward_pallas.1} parent=1 // pred_region
      _
    $region5: #{maxout_forward_pallas.1} parent=1 // pred_fallthru
      _
    // Predicated region
    $region6: #{maxout_forward_pallas.1} parent=1 // pred_check
      _
    $region7: #{maxout_forward_pallas.1} parent=1 // pred_check_branch
      %17 = sbr.rel (0) target = $region9
    $region8: #{maxout_forward_pallas.1} parent=1 // pred_region
      %s19 = ssub.s32 3072, 3072
      %20 = vsyncadd [#allocation3], %s19
      %s21 = sshll.u32 [#allocation2], 4
      %s22 = int_to_ptr.vmem [resolvable:$true] %s21
      %27 = dma.hbm_to_vmem [thread:$0]  %s1, 3072, %s22, [#allocation3], 192, 192, 12
    $region9: #{maxout_forward_pallas.1} parent=1 // pred_fallthru
      _
    // Predicated region
    $region10: #{maxout_forward_pallas.1} parent=1 // pred_check
      _
    $region11: #{maxout_forward_pallas.1} parent=1 // pred_check_branch
      %29 = sbr.rel (0) target = $region13
    $region12: #{maxout_forward_pallas.1} parent=1 // pred_region
      _
    $region13: #{maxout_forward_pallas.1} parent=1 // pred_fallthru
      _
    // Predicated region
    $region14: #{maxout_forward_pallas.1} parent=1 // pred_check
      _
    $region15: #{maxout_forward_pallas.1} parent=1 // pred_check_branch
      %31 = sbr.rel (0) target = $region17
    $region16: #{maxout_forward_pallas.1} parent=1 // pred_region
      %s33 = ssub.s32 6144, 6144
      %34 = vsyncadd [#allocation5], %s33
      %s35 = sshll.u32 [#allocation4], 4
      %s36 = int_to_ptr.vmem [resolvable:$true] %s35
      %41 = dma.hbm_to_vmem [thread:$0]  %s3, 6144, %s36, [#allocation5], 192, 192, 12
    $region17: #{maxout_forward_pallas.1} parent=1 // pred_fallthru
      _
    // Predicated region
    $region18: #{maxout_forward_pallas.1} parent=1 // pred_check
      _
    $region19: #{maxout_forward_pallas.1} parent=1 // pred_check_branch
      %43 = sbr.rel (0) target = $region21
    $region20: #{maxout_forward_pallas.1} parent=1 // pred_region
      _
    $region21: #{maxout_forward_pallas.1} parent=1 // pred_fallthru
      _
    // Predicated region
    $region22: #{maxout_forward_pallas.1} parent=1 // pred_check
      _
    $region23: #{maxout_forward_pallas.1} parent=1 // pred_check_branch
      %45 = sbr.rel (0) target = $region25
    $region24: #{maxout_forward_pallas.1} parent=1 // pred_region
      %s47 = ssub.s32 1024, 1024
      %48 = vsyncadd [#allocation5], %s47
      %s49 = sshll.u32 [#allocation6], 4
      %s50 = int_to_ptr.vmem [resolvable:$true] %s49
      %55 = dma.hbm_to_vmem [thread:$0]  %s5, 1024, %s50, [#allocation5], 64, 64, 4
    $region25: #{maxout_forward_pallas.1} parent=1 // pred_fallthru
      _
    // Predicated region
    $region26: #{maxout_forward_pallas.1} parent=1 // pred_check
      _
    $region27: #{maxout_forward_pallas.1} parent=1 // pred_check_branch
      %57 = sbr.rel (0) target = $region29
    $region28: #{maxout_forward_pallas.1} parent=1 // pred_region
      _
    $region29: #{maxout_forward_pallas.1} parent=1 // pred_fallthru
      _
    // Predicated region
    $region30: #{maxout_forward_pallas.1} parent=1 // pred_check
      _
    $region31: #{maxout_forward_pallas.1} parent=1 // pred_check_branch
      %59 = sbr.rel (0) target = $region33
    $region32: #{maxout_forward_pallas.1} parent=1 // pred_region
      %60 = dma.done [#allocation3], 3072
    $region33: #{maxout_forward_pallas.1} parent=1 // pred_fallthru
      _
    // Predicated region
    $region34: #{maxout_forward_pallas.1} parent=1 // pred_check
      _
    $region35: #{maxout_forward_pallas.1} parent=1 // pred_check_branch
      %62 = sbr.rel (0) target = $region37
    $region36: #{maxout_forward_pallas.1} parent=1 // pred_region
      %63 = dma.done [#allocation5], 6144
    $region37: #{maxout_forward_pallas.1} parent=1 // pred_fallthru
      _
    // Predicated region
    $region38: #{maxout_forward_pallas.1} parent=1 // pred_check
      _
    $region39: #{maxout_forward_pallas.1} parent=1 // pred_check_branch
      %65 = sbr.rel (0) target = $region41
    $region40: #{maxout_forward_pallas.1} parent=1 // pred_region
      %66 = dma.done [#allocation5], 1024
    $region41: #{maxout_forward_pallas.1} parent=1 // pred_fallthru
      _
    %v68 = vld [vmem:[%s0] sm:$0xf]
    %v69 = vld [vmem:[%s0 + $0x4] sm:$0xf]
    %v70 = vld [vmem:[#allocation2] sm:$0xff]
    %v71 = vld [vmem:[#allocation2 + $0x8] sm:$0xf]
    %v72 = vld [vmem:[#allocation2 + $0xc] sm:$0xff]
    %v73 = vld [vmem:[#allocation2 + $0x14] sm:$0xf]
    %v74 = vld [vmem:[#allocation2 + $0x18] sm:$0xff]
    %v75 = vld [vmem:[#allocation2 + $0x20] sm:$0xf]
    %v76 = vld [vmem:[#allocation2 + $0x24] sm:$0xff]
    %v77 = vld [vmem:[#allocation2 + $0x2c] sm:$0xf]
    %v78 = vld [vmem:[#allocation2 + $0x30] sm:$0xff]
    %v79 = vld [vmem:[#allocation2 + $0x38] sm:$0xf]
    %v80 = vld [vmem:[#allocation2 + $0x3c] sm:$0xff]
    %v81 = vld [vmem:[#allocation2 + $0x44] sm:$0xf]
    %v82 = vld [vmem:[#allocation2 + $0x48] sm:$0xff]
    %v83 = vld [vmem:[#allocation2 + $0x50] sm:$0xf]
    %v84 = vld [vmem:[#allocation2 + $0x54] sm:$0xff]
    %v85 = vld [vmem:[#allocation2 + $0x5c] sm:$0xf]
    %v86 = vld [vmem:[#allocation2 + $0x60] sm:$0xff]
    %v87 = vld [vmem:[#allocation2 + $0x68] sm:$0xf]
    %v88 = vld [vmem:[#allocation2 + $0x6c] sm:$0xff]
    %v89 = vld [vmem:[#allocation2 + $0x74] sm:$0xf]
    %v90 = vld [vmem:[#allocation2 + $0x78] sm:$0xff]
    %v91 = vld [vmem:[#allocation2 + $0x80] sm:$0xf]
    %v92 = vld [vmem:[#allocation2 + $0x84] sm:$0xff]
    %v93 = vld [vmem:[#allocation2 + $0x8c] sm:$0xf]
    %v94 = vld [vmem:[#allocation2 + $0x90] sm:$0xff]
    %v95 = vld [vmem:[#allocation2 + $0x98] sm:$0xf]
    %v96 = vld [vmem:[#allocation2 + $0x9c] sm:$0xff]
    %v97 = vld [vmem:[#allocation2 + $0xa4] sm:$0xf]
    %v98 = vld [vmem:[#allocation2 + $0xa8] sm:$0xff]
    %v99 = vld [vmem:[#allocation2 + $0xb0] sm:$0xf]
    %v100 = vld [vmem:[#allocation2 + $0xb4] sm:$0xff]
    %v101 = vld [vmem:[#allocation2 + $0xbc] sm:$0xf]
    %v102 = vld [vmem:[%s2] sm:$0x7]
    %v104 = vlaneseq
    %v105 = vshrl.u32 %v104, 7
    %v106 = vsub.s32 0, %v105
    %v107 = vrot.slane %v102, %v106
    %v108 = vlaneseq
    %v109 = vshrl.u32 %v108, 7
    %v110 = vsub.s32 1, %v109
    %v111 = vrot.slane %v102, %v110
    %v112 = vlaneseq
    %v113 = vshrl.u32 %v112, 7
    %v114 = vsub.s32 2, %v113
    %v115 = vrot.slane %v102, %v114
    %v121 = vunpack.c.l.b16 %v68
    %v122 = vunpack.c.l.b16 %v69
    %v123 = vpack.c.b16 %v122, %v121
    %v157 = vunpack.c.l.b16 %v70
    %v158 = vunpack.c.h.b16 %v70
    %v159 = vunpack.c.l.b16 %v71
    %v160 = vunpack.c.l.b16 %v72
    %v161 = vunpack.c.h.b16 %v72
    %v162 = vunpack.c.l.b16 %v73
    %v163 = vunpack.c.l.b16 %v74
    %v164 = vunpack.c.h.b16 %v74
    %v165 = vunpack.c.l.b16 %v75
    %v166 = vunpack.c.l.b16 %v76
    %v167 = vunpack.c.h.b16 %v76
    %v168 = vunpack.c.l.b16 %v77
    %v169 = vunpack.c.l.b16 %v78
    %v170 = vunpack.c.h.b16 %v78
    %v171 = vunpack.c.l.b16 %v79
    %v172 = vunpack.c.l.b16 %v80
    %v173 = vunpack.c.h.b16 %v80
    %v174 = vunpack.c.l.b16 %v81
    %v175 = vunpack.c.l.b16 %v82
    %v176 = vunpack.c.h.b16 %v82
    %v177 = vunpack.c.l.b16 %v83
    %v178 = vunpack.c.l.b16 %v84
    %v179 = vunpack.c.h.b16 %v84
    %v180 = vunpack.c.l.b16 %v85
    %v181 = vunpack.c.l.b16 %v86
    %v182 = vunpack.c.h.b16 %v86
    %v183 = vunpack.c.l.b16 %v87
    %v184 = vunpack.c.l.b16 %v88
    %v185 = vunpack.c.h.b16 %v88
    %v186 = vunpack.c.l.b16 %v89
    %v187 = vunpack.c.l.b16 %v90
    %v188 = vunpack.c.h.b16 %v90
    %v189 = vunpack.c.l.b16 %v91
    %v190 = vunpack.c.l.b16 %v92
    %v191 = vunpack.c.h.b16 %v92
    %v192 = vunpack.c.l.b16 %v93
    %v193 = vunpack.c.l.b16 %v94
    %v194 = vunpack.c.h.b16 %v94
    %v195 = vunpack.c.l.b16 %v95
    %v196 = vunpack.c.l.b16 %v96
    %v197 = vunpack.c.h.b16 %v96
    %v198 = vunpack.c.l.b16 %v97
    %v199 = vunpack.c.l.b16 %v98
    %v200 = vunpack.c.h.b16 %v98
    %v201 = vunpack.c.l.b16 %v99
    %v202 = vunpack.c.l.b16 %v100
    %v203 = vunpack.c.h.b16 %v100
    %v204 = vunpack.c.l.b16 %v101
    %v205 = vpack.c.b16 %v160, %v157
    %v206 = vpack.c.b16 %v161, %v158
    %v207 = vpack.c.b16 %v162, %v159
    %v208 = vpack.c.b16 %v166, %v163
    %v209 = vpack.c.b16 %v167, %v164
    %v210 = vpack.c.b16 %v168, %v165
    %v211 = vpack.c.b16 %v172, %v169
    %v212 = vpack.c.b16 %v173, %v170
    %v213 = vpack.c.b16 %v174, %v171
    %v214 = vpack.c.b16 %v178, %v175
    %v215 = vpack.c.b16 %v179, %v176
    %v216 = vpack.c.b16 %v180, %v177
    %v217 = vpack.c.b16 %v184, %v181
    %v218 = vpack.c.b16 %v185, %v182
    %v219 = vpack.c.b16 %v186, %v183
    %v220 = vpack.c.b16 %v190, %v187
    %v221 = vpack.c.b16 %v191, %v188
    %v222 = vpack.c.b16 %v192, %v189
    %v223 = vpack.c.b16 %v196, %v193
    %v224 = vpack.c.b16 %v197, %v194
    %v225 = vpack.c.b16 %v198, %v195
    %v226 = vpack.c.b16 %v202, %v199
    %v227 = vpack.c.b16 %v203, %v200
    %v228 = vpack.c.b16 %v204, %v201
    %253 = vmatprep.subr.bf16.mxu0 %v227
    %254 = vmatpush1.bf16.msra.mxu0 %v226
    %255 = vmatprep.subr.bf16.mxu0 %v224
    %256 = vmatpush1.bf16.msra.mxu0 %v223
    %257 = vmatprep.subr.bf16.mxu0 %v221
    %258 = vmatpush1.bf16.msra.mxu0 %v220
    %259 = vmatprep.subr.bf16.mxu0 %v218
    %260 = vmatpush1.bf16.msra.mxu0 %v217
    %261 = vmatprep.subr.bf16.mxu0 %v215
    %262 = vmatpush1.bf16.msra.mxu0 %v214
    %263 = vmatprep.subr.bf16.mxu0 %v212
    %264 = vmatpush1.bf16.msra.mxu0 %v211
    %265 = vmatprep.subr.bf16.mxu0 %v209
    %266 = vmatpush1.bf16.msra.mxu0 %v208
    %267 = vmatprep.subr.bf16.mxu0 %v206
    %268 = vmatpush1.bf16.msra.mxu0 %v205
    %269 = vmatprep.subr.bf16.mxu0 0
    %270 = vmatpush2.bf16.msra.mxu0 0
    %271 = vmatprep.subr.bf16.mxu0 0
    %272 = vmatpush2.bf16.msra.mxu0 0
    %273 = vmatprep.subr.bf16.mxu0 0
    %274 = vmatpush2.bf16.msra.mxu0 0
    %275 = vmatprep.subr.bf16.mxu0 0
    %276 = vmatpush2.bf16.msra.mxu0 0
    %277 = vmatprep.subr.bf16.mxu0 0
    %278 = vmatpush2.bf16.msra.mxu0 0
    %279 = vmatprep.subr.bf16.mxu0 0
    %280 = vmatpush2.bf16.msra.mxu0 0
    %281 = vmatprep.subr.bf16.mxu0 0
    %282 = vmatpush2.bf16.msra.mxu0 0
    %283 = vmatprep.subr.bf16.mxu0 0
    %284 = vmatpush2.bf16.msra.mxu0 0
    %285 = vmatprep.mubr.bf16.mxu0 0
    %286 = vmatmul.mubr.bf16.gmra.mxu0 %v123
    %v287 = vpop.f32.mrf.mxu0
    %v288 = vadd.f32 %v107, %v287
    %v289 = vpop.f32.mrf.mxu0
    %v290 = vadd.f32 %v111, %v289
    %v291 = vpop.f32.mrf.mxu0
    %v292 = vadd.f32 %v107, %v291
    %v293 = vpop.f32.mrf.mxu0
    %v294 = vadd.f32 %v111, %v293
    %295 = vdwg.mxu0
    %296 = vmatprep.subr.bf16.mxu0 0
    %297 = vmatpush1.bf16.msra.mxu0 %v228
    %298 = vmatprep.subr.bf16.mxu0 0
    %299 = vmatpush1.bf16.msra.mxu0 %v225
    %300 = vmatprep.subr.bf16.mxu0 0
    %301 = vmatpush1.bf16.msra.mxu0 %v222
    %302 = vmatprep.subr.bf16.mxu0 0
    %303 = vmatpush1.bf16.msra.mxu0 %v219
    %304 = vmatprep.subr.bf16.mxu0 0
    %305 = vmatpush1.bf16.msra.mxu0 %v216
    %306 = vmatprep.subr.bf16.mxu0 0
    %307 = vmatpush1.bf16.msra.mxu0 %v213
    %308 = vmatprep.subr.bf16.mxu0 0
    %309 = vmatpush1.bf16.msra.mxu0 %v210
    %310 = vmatprep.subr.bf16.mxu0 0
    %311 = vmatpush1.bf16.msra.mxu0 %v207
    %312 = vmatprep.subr.bf16.mxu0 0
    %313 = vmatpush2.bf16.msra.mxu0 0
    %314 = vmatprep.subr.bf16.mxu0 0
    %315 = vmatpush2.bf16.msra.mxu0 0
    %316 = vmatprep.subr.bf16.mxu0 0
    %317 = vmatpush2.bf16.msra.mxu0 0
    %318 = vmatprep.subr.bf16.mxu0 0
    %319 = vmatpush2.bf16.msra.mxu0 0
    %320 = vmatprep.subr.bf16.mxu0 0
    %321 = vmatpush2.bf16.msra.mxu0 0
    %322 = vmatprep.subr.bf16.mxu0 0
    %323 = vmatpush2.bf16.msra.mxu0 0
    %324 = vmatprep.subr.bf16.mxu0 0
    %325 = vmatpush2.bf16.msra.mxu0 0
    %326 = vmatprep.subr.bf16.mxu0 0
    %327 = vmatpush2.bf16.msra.mxu0 0
    %328 = vmatprep.mubr.bf16.mxu0 0
    %329 = vmatmul.mubr.bf16.gmra.mxu0 %v123
    %v330 = vpop.f32.mrf.mxu0
    %v331 = vadd.f32 %v115, %v330
    %v332 = vpop.f32.mrf.mxu0
    %v333 = vpop.f32.mrf.mxu0
    %v334 = vadd.f32 %v115, %v333
    %v335 = vpop.f32.mrf.mxu0
    %336 = vdwg.mxu0
    %v337 = vmax.f32 %v288, %v290
    %v338 = vmax.f32 %v292, %v294
    %v339 = vmax.f32 %v337, %v331
    %v340 = vmax.f32 %v338, %v334
    %v341 = vld [vmem:[#allocation4] sm:$0xff]
    %v342 = vld [vmem:[#allocation4 + $0x8] sm:$0xf]
    %v343 = vld [vmem:[#allocation4 + $0xc] sm:$0xff]
    %v344 = vld [vmem:[#allocation4 + $0x14] sm:$0xf]
    %v345 = vld [vmem:[#allocation4 + $0x18] sm:$0xff]
    %v346 = vld [vmem:[#allocation4 + $0x20] sm:$0xf]
    %v347 = vld [vmem:[#allocation4 + $0x24] sm:$0xff]
    %v348 = vld [vmem:[#allocation4 + $0x2c] sm:$0xf]
    %v349 = vld [vmem:[#allocation4 + $0x30] sm:$0xff]
    %v350 = vld [vmem:[#allocation4 + $0x38] sm:$0xf]
    %v351 = vld [vmem:[#allocation4 + $0x3c] sm:$0xff]
    %v352 = vld [vmem:[#allocation4 + $0x44] sm:$0xf]
    %v353 = vld [vmem:[#allocation4 + $0x48] sm:$0xff]
    %v354 = vld [vmem:[#allocation4 + $0x50] sm:$0xf]
    %v355 = vld [vmem:[#allocation4 + $0x54] sm:$0xff]
    %v356 = vld [vmem:[#allocation4 + $0x5c] sm:$0xf]
    %v357 = vld [vmem:[#allocation4 + $0x60] sm:$0xff]
    %v358 = vld [vmem:[#allocation4 + $0x68] sm:$0xf]
    %v359 = vld [vmem:[#allocation4 + $0x6c] sm:$0xff]
    %v360 = vld [vmem:[#allocation4 + $0x74] sm:$0xf]
    %v361 = vld [vmem:[#allocation4 + $0x78] sm:$0xff]
    %v362 = vld [vmem:[#allocation4 + $0x80] sm:$0xf]
    %v363 = vld [vmem:[#allocation4 + $0x84] sm:$0xff]
    %v364 = vld [vmem:[#allocation4 + $0x8c] sm:$0xf]
    %v365 = vld [vmem:[#allocation4 + $0x90] sm:$0xff]
    %v366 = vld [vmem:[#allocation4 + $0x98] sm:$0xf]
    %v367 = vld [vmem:[#allocation4 + $0x9c] sm:$0xff]
    %v368 = vld [vmem:[#allocation4 + $0xa4] sm:$0xf]
    %v369 = vld [vmem:[#allocation4 + $0xa8] sm:$0xff]
    %v370 = vld [vmem:[#allocation4 + $0xb0] sm:$0xf]
    %v371 = vld [vmem:[#allocation4 + $0xb4] sm:$0xff]
    %v372 = vld [vmem:[#allocation4 + $0xbc] sm:$0xf]
    %v373 = vld [vmem:[%s4] sm:$0x7]
    %v374 = vpack.c.bf16 %v340, %v339
    %v376 = vlaneseq
    %v377 = vshrl.u32 %v376, 7
    %v378 = vsub.s32 0, %v377
    %v379 = vrot.slane %v373, %v378
    %v380 = vlaneseq
    %v381 = vshrl.u32 %v380, 7
    %v382 = vsub.s32 1, %v381
    %v383 = vrot.slane %v373, %v382
    %v384 = vlaneseq
    %v385 = vshrl.u32 %v384, 7
    %v386 = vsub.s32 2, %v385
    %v387 = vrot.slane %v373, %v386
    %v423 = vunpack.c.l.b16 %v341
    %v424 = vunpack.c.h.b16 %v341
    %v425 = vunpack.c.l.b16 %v342
    %v426 = vunpack.c.l.b16 %v343
    %v427 = vunpack.c.h.b16 %v343
    %v428 = vunpack.c.l.b16 %v344
    %v429 = vunpack.c.l.b16 %v345
    %v430 = vunpack.c.h.b16 %v345
    %v431 = vunpack.c.l.b16 %v346
    %v432 = vunpack.c.l.b16 %v347
    %v433 = vunpack.c.h.b16 %v347
    %v434 = vunpack.c.l.b16 %v348
    %v435 = vunpack.c.l.b16 %v349
    %v436 = vunpack.c.h.b16 %v349
    %v437 = vunpack.c.l.b16 %v350
    %v438 = vunpack.c.l.b16 %v351
    %v439 = vunpack.c.h.b16 %v351
    %v440 = vunpack.c.l.b16 %v352
    %v441 = vunpack.c.l.b16 %v353
    %v442 = vunpack.c.h.b16 %v353
    %v443 = vunpack.c.l.b16 %v354
    %v444 = vunpack.c.l.b16 %v355
    %v445 = vunpack.c.h.b16 %v355
    %v446 = vunpack.c.l.b16 %v356
    %v447 = vunpack.c.l.b16 %v357
    %v448 = vunpack.c.h.b16 %v357
    %v449 = vunpack.c.l.b16 %v358
    %v450 = vunpack.c.l.b16 %v359
    %v451 = vunpack.c.h.b16 %v359
    %v452 = vunpack.c.l.b16 %v360
    %v453 = vunpack.c.l.b16 %v361
    %v454 = vunpack.c.h.b16 %v361
    %v455 = vunpack.c.l.b16 %v362
    %v456 = vunpack.c.l.b16 %v363
    %v457 = vunpack.c.h.b16 %v363
    %v458 = vunpack.c.l.b16 %v364
    %v459 = vunpack.c.l.b16 %v365
    %v460 = vunpack.c.h.b16 %v365
    %v461 = vunpack.c.l.b16 %v366
    %v462 = vunpack.c.l.b16 %v367
    %v463 = vunpack.c.h.b16 %v367
    %v464 = vunpack.c.l.b16 %v368
    %v465 = vunpack.c.l.b16 %v369
    %v466 = vunpack.c.h.b16 %v369
    %v467 = vunpack.c.l.b16 %v370
    %v468 = vunpack.c.l.b16 %v371
    %v469 = vunpack.c.h.b16 %v371
    %v470 = vunpack.c.l.b16 %v372
    %v471 = vpack.c.b16 %v426, %v423
    %v472 = vpack.c.b16 %v427, %v424
    %v473 = vpack.c.b16 %v428, %v425
    %v474 = vpack.c.b16 %v432, %v429
    %v475 = vpack.c.b16 %v433, %v430
    %v476 = vpack.c.b16 %v434, %v431
    %v477 = vpack.c.b16 %v438, %v435
    %v478 = vpack.c.b16 %v439, %v436
    %v479 = vpack.c.b16 %v440, %v437
    %v480 = vpack.c.b16 %v444, %v441
    %v481 = vpack.c.b16 %v445, %v442
    %v482 = vpack.c.b16 %v446, %v443
    %v483 = vpack.c.b16 %v450, %v447
    %v484 = vpack.c.b16 %v451, %v448
    %v485 = vpack.c.b16 %v452, %v449
    %v486 = vpack.c.b16 %v456, %v453
    %v487 = vpack.c.b16 %v457, %v454
    %v488 = vpack.c.b16 %v458, %v455
    %v489 = vpack.c.b16 %v462, %v459
    %v490 = vpack.c.b16 %v463, %v460
    %v491 = vpack.c.b16 %v464, %v461
    %v492 = vpack.c.b16 %v468, %v465
    %v493 = vpack.c.b16 %v469, %v466
    %v494 = vpack.c.b16 %v470, %v467
    %519 = vmatprep.subr.bf16.mxu0 %v493
    %520 = vmatpush1.bf16.msra.mxu0 %v492
    %521 = vmatprep.subr.bf16.mxu0 %v490
    %522 = vmatpush1.bf16.msra.mxu0 %v489
    %523 = vmatprep.subr.bf16.mxu0 %v487
    %524 = vmatpush1.bf16.msra.mxu0 %v486
    %525 = vmatprep.subr.bf16.mxu0 %v484
    %526 = vmatpush1.bf16.msra.mxu0 %v483
    %527 = vmatprep.subr.bf16.mxu0 %v481
    %528 = vmatpush1.bf16.msra.mxu0 %v480
    %529 = vmatprep.subr.bf16.mxu0 %v478
    %530 = vmatpush1.bf16.msra.mxu0 %v477
    %531 = vmatprep.subr.bf16.mxu0 %v475
    %532 = vmatpush1.bf16.msra.mxu0 %v474
    %533 = vmatprep.subr.bf16.mxu0 %v472
    %534 = vmatpush1.bf16.msra.mxu0 %v471
    %535 = vmatprep.subr.bf16.mxu0 0
    %536 = vmatpush2.bf16.msra.mxu0 0
    %537 = vmatprep.subr.bf16.mxu0 0
    %538 = vmatpush2.bf16.msra.mxu0 0
    %539 = vmatprep.subr.bf16.mxu0 0
    %540 = vmatpush2.bf16.msra.mxu0 0
    %541 = vmatprep.subr.bf16.mxu0 0
    %542 = vmatpush2.bf16.msra.mxu0 0
    %543 = vmatprep.subr.bf16.mxu0 0
    %544 = vmatpush2.bf16.msra.mxu0 0
    %545 = vmatprep.subr.bf16.mxu0 0
    %546 = vmatpush2.bf16.msra.mxu0 0
    %547 = vmatprep.subr.bf16.mxu0 0
    %548 = vmatpush2.bf16.msra.mxu0 0
    %549 = vmatprep.subr.bf16.mxu0 0
    %550 = vmatpush2.bf16.msra.mxu0 0
    %551 = vmatprep.mubr.bf16.mxu0 0
    %552 = vmatmul.mubr.bf16.gmra.mxu0 %v374
    %v553 = vpop.f32.mrf.mxu0
    %v554 = vadd.f32 %v379, %v553
    %v555 = vpop.f32.mrf.mxu0
    %v556 = vadd.f32 %v383, %v555
    %v557 = vpop.f32.mrf.mxu0
    %v558 = vadd.f32 %v379, %v557
    %v559 = vpop.f32.mrf.mxu0
    %v560 = vadd.f32 %v383, %v559
    %561 = vdwg.mxu0
    %562 = vmatprep.subr.bf16.mxu0 0
    %563 = vmatpush1.bf16.msra.mxu0 %v494
    %564 = vmatprep.subr.bf16.mxu0 0
    %565 = vmatpush1.bf16.msra.mxu0 %v491
    %566 = vmatprep.subr.bf16.mxu0 0
    %567 = vmatpush1.bf16.msra.mxu0 %v488
    %568 = vmatprep.subr.bf16.mxu0 0
    %569 = vmatpush1.bf16.msra.mxu0 %v485
    %570 = vmatprep.subr.bf16.mxu0 0
    %571 = vmatpush1.bf16.msra.mxu0 %v482
    %572 = vmatprep.subr.bf16.mxu0 0
    %573 = vmatpush1.bf16.msra.mxu0 %v479
    %574 = vmatprep.subr.bf16.mxu0 0
    %575 = vmatpush1.bf16.msra.mxu0 %v476
    %576 = vmatprep.subr.bf16.mxu0 0
    %577 = vmatpush1.bf16.msra.mxu0 %v473
    %578 = vmatprep.subr.bf16.mxu0 0
    %579 = vmatpush2.bf16.msra.mxu0 0
    %580 = vmatprep.subr.bf16.mxu0 0
    %581 = vmatpush2.bf16.msra.mxu0 0
    %582 = vmatprep.subr.bf16.mxu0 0
    %583 = vmatpush2.bf16.msra.mxu0 0
    %584 = vmatprep.subr.bf16.mxu0 0
    %585 = vmatpush2.bf16.msra.mxu0 0
    %586 = vmatprep.subr.bf16.mxu0 0
    %587 = vmatpush2.bf16.msra.mxu0 0
    %588 = vmatprep.subr.bf16.mxu0 0
    %589 = vmatpush2.bf16.msra.mxu0 0
    %590 = vmatprep.subr.bf16.mxu0 0
    %591 = vmatpush2.bf16.msra.mxu0 0
    %592 = vmatprep.subr.bf16.mxu0 0
    %593 = vmatpush2.bf16.msra.mxu0 0
    %594 = vmatprep.mubr.bf16.mxu0 0
    %595 = vmatmul.mubr.bf16.gmra.mxu0 %v374
    %v596 = vpop.f32.mrf.mxu0
    %v597 = vadd.f32 %v387, %v596
    %v598 = vpop.f32.mrf.mxu0
    %v599 = vpop.f32.mrf.mxu0
    %v600 = vadd.f32 %v387, %v599
    %v601 = vpop.f32.mrf.mxu0
    %602 = vdwg.mxu0
    %v603 = vmax.f32 %v554, %v556
    %v604 = vmax.f32 %v558, %v560
    %v605 = vmax.f32 %v603, %v597
    %v606 = vmax.f32 %v604, %v600
    %s607 = scalar_lea.vmem [#allocation4], 192
    %v608 = vld [vmem:[%s607] sm:$0xff]
    %v609 = vld [vmem:[%s607 + $0x8] sm:$0xf]
    %v610 = vld [vmem:[%s607 + $0xc] sm:$0xff]
    %v611 = vld [vmem:[%s607 + $0x14] sm:$0xf]
    %v612 = vld [vmem:[%s607 + $0x18] sm:$0xff]
    %v613 = vld [vmem:[%s607 + $0x20] sm:$0xf]
    %v614 = vld [vmem:[%s607 + $0x24] sm:$0xff]
    %v615 = vld [vmem:[%s607 + $0x2c] sm:$0xf]
    %v616 = vld [vmem:[%s607 + $0x30] sm:$0xff]
    %v617 = vld [vmem:[%s607 + $0x38] sm:$0xf]
    %v618 = vld [vmem:[%s607 + $0x3c] sm:$0xff]
    %v619 = vld [vmem:[%s607 + $0x44] sm:$0xf]
    %v620 = vld [vmem:[%s607 + $0x48] sm:$0xff]
    %v621 = vld [vmem:[%s607 + $0x50] sm:$0xf]
    %v622 = vld [vmem:[%s607 + $0x54] sm:$0xff]
    %v623 = vld [vmem:[%s607 + $0x5c] sm:$0xf]
    %v624 = vld [vmem:[%s607 + $0x60] sm:$0xff]
    %v625 = vld [vmem:[%s607 + $0x68] sm:$0xf]
    %v626 = vld [vmem:[%s607 + $0x6c] sm:$0xff]
    %v627 = vld [vmem:[%s607 + $0x74] sm:$0xf]
    %v628 = vld [vmem:[%s607 + $0x78] sm:$0xff]
    %v629 = vld [vmem:[%s607 + $0x80] sm:$0xf]
    %v630 = vld [vmem:[%s607 + $0x84] sm:$0xff]
    %v631 = vld [vmem:[%s607 + $0x8c] sm:$0xf]
    %v632 = vld [vmem:[%s607 + $0x90] sm:$0xff]
    %v633 = vld [vmem:[%s607 + $0x98] sm:$0xf]
    %v634 = vld [vmem:[%s607 + $0x9c] sm:$0xff]
    %v635 = vld [vmem:[%s607 + $0xa4] sm:$0xf]
    %v636 = vld [vmem:[%s607 + $0xa8] sm:$0xff]
    %v637 = vld [vmem:[%s607 + $0xb0] sm:$0xf]
    %v638 = vld [vmem:[%s607 + $0xb4] sm:$0xff]
    %v639 = vld [vmem:[%s607 + $0xbc] sm:$0xf]
    %s640 = scalar_lea.vmem %s4, 3
    %v641 = vld [vmem:[%s640] sm:$0x7]
    %v642 = vpack.c.bf16 %v606, %v605
    %v644 = vlaneseq
    %v645 = vshrl.u32 %v644, 7
    %v646 = vsub.s32 0, %v645
    %v647 = vrot.slane %v641, %v646
    %v648 = vlaneseq
    %v649 = vshrl.u32 %v648, 7
    %v650 = vsub.s32 1, %v649
    %v651 = vrot.slane %v641, %v650
    %v652 = vlaneseq
    %v653 = vshrl.u32 %v652, 7
    %v654 = vsub.s32 2, %v653
    %v655 = vrot.slane %v641, %v654
    %v691 = vunpack.c.l.b16 %v608
    %v692 = vunpack.c.h.b16 %v608
    %v693 = vunpack.c.l.b16 %v609
    %v694 = vunpack.c.l.b16 %v610
    %v695 = vunpack.c.h.b16 %v610
    %v696 = vunpack.c.l.b16 %v611
    %v697 = vunpack.c.l.b16 %v612
    %v698 = vunpack.c.h.b16 %v612
    %v699 = vunpack.c.l.b16 %v613
    %v700 = vunpack.c.l.b16 %v614
    %v701 = vunpack.c.h.b16 %v614
    %v702 = vunpack.c.l.b16 %v615
    %v703 = vunpack.c.l.b16 %v616
    %v704 = vunpack.c.h.b16 %v616
    %v705 = vunpack.c.l.b16 %v617
    %v706 = vunpack.c.l.b16 %v618
    %v707 = vunpack.c.h.b16 %v618
    %v708 = vunpack.c.l.b16 %v619
    %v709 = vunpack.c.l.b16 %v620
    %v710 = vunpack.c.h.b16 %v620
    %v711 = vunpack.c.l.b16 %v621
    %v712 = vunpack.c.l.b16 %v622
    %v713 = vunpack.c.h.b16 %v622
    %v714 = vunpack.c.l.b16 %v623
    %v715 = vunpack.c.l.b16 %v624
    %v716 = vunpack.c.h.b16 %v624
    %v717 = vunpack.c.l.b16 %v625
    %v718 = vunpack.c.l.b16 %v626
    %v719 = vunpack.c.h.b16 %v626
    %v720 = vunpack.c.l.b16 %v627
    %v721 = vunpack.c.l.b16 %v628
    %v722 = vunpack.c.h.b16 %v628
    %v723 = vunpack.c.l.b16 %v629
    %v724 = vunpack.c.l.b16 %v630
    %v725 = vunpack.c.h.b16 %v630
    %v726 = vunpack.c.l.b16 %v631
    %v727 = vunpack.c.l.b16 %v632
    %v728 = vunpack.c.h.b16 %v632
    %v729 = vunpack.c.l.b16 %v633
    %v730 = vunpack.c.l.b16 %v634
    %v731 = vunpack.c.h.b16 %v634
    %v732 = vunpack.c.l.b16 %v635
    %v733 = vunpack.c.l.b16 %v636
    %v734 = vunpack.c.h.b16 %v636
    %v735 = vunpack.c.l.b16 %v637
    %v736 = vunpack.c.l.b16 %v638
    %v737 = vunpack.c.h.b16 %v638
    %v738 = vunpack.c.l.b16 %v639
    %v739 = vpack.c.b16 %v694, %v691
    %v740 = vpack.c.b16 %v695, %v692
    %v741 = vpack.c.b16 %v696, %v693
    %v742 = vpack.c.b16 %v700, %v697
    %v743 = vpack.c.b16 %v701, %v698
    %v744 = vpack.c.b16 %v702, %v699
    %v745 = vpack.c.b16 %v706, %v703
    %v746 = vpack.c.b16 %v707, %v704
    %v747 = vpack.c.b16 %v708, %v705
    %v748 = vpack.c.b16 %v712, %v709
    %v749 = vpack.c.b16 %v713, %v710
    %v750 = vpack.c.b16 %v714, %v711
    %v751 = vpack.c.b16 %v718, %v715
    %v752 = vpack.c.b16 %v719, %v716
    %v753 = vpack.c.b16 %v720, %v717
    %v754 = vpack.c.b16 %v724, %v721
    %v755 = vpack.c.b16 %v725, %v722
    %v756 = vpack.c.b16 %v726, %v723
    %v757 = vpack.c.b16 %v730, %v727
    %v758 = vpack.c.b16 %v731, %v728
    %v759 = vpack.c.b16 %v732, %v729
    %v760 = vpack.c.b16 %v736, %v733
    %v761 = vpack.c.b16 %v737, %v734
    %v762 = vpack.c.b16 %v738, %v735
    %787 = vmatprep.subr.bf16.mxu0 %v761
    %788 = vmatpush1.bf16.msra.mxu0 %v760
    %789 = vmatprep.subr.bf16.mxu0 %v758
    %790 = vmatpush1.bf16.msra.mxu0 %v757
    %791 = vmatprep.subr.bf16.mxu0 %v755
    %792 = vmatpush1.bf16.msra.mxu0 %v754
    %793 = vmatprep.subr.bf16.mxu0 %v752
    %794 = vmatpush1.bf16.msra.mxu0 %v751
    %795 = vmatprep.subr.bf16.mxu0 %v749
    %796 = vmatpush1.bf16.msra.mxu0 %v748
    %797 = vmatprep.subr.bf16.mxu0 %v746
    %798 = vmatpush1.bf16.msra.mxu0 %v745
    %799 = vmatprep.subr.bf16.mxu0 %v743
    %800 = vmatpush1.bf16.msra.mxu0 %v742
    %801 = vmatprep.subr.bf16.mxu0 %v740
    %802 = vmatpush1.bf16.msra.mxu0 %v739
    %803 = vmatprep.subr.bf16.mxu0 0
    %804 = vmatpush2.bf16.msra.mxu0 0
    %805 = vmatprep.subr.bf16.mxu0 0
    %806 = vmatpush2.bf16.msra.mxu0 0
    %807 = vmatprep.subr.bf16.mxu0 0
    %808 = vmatpush2.bf16.msra.mxu0 0
    %809 = vmatprep.subr.bf16.mxu0 0
    %810 = vmatpush2.bf16.msra.mxu0 0
    %811 = vmatprep.subr.bf16.mxu0 0
    %812 = vmatpush2.bf16.msra.mxu0 0
    %813 = vmatprep.subr.bf16.mxu0 0
    %814 = vmatpush2.bf16.msra.mxu0 0
    %815 = vmatprep.subr.bf16.mxu0 0
    %816 = vmatpush2.bf16.msra.mxu0 0
    %817 = vmatprep.subr.bf16.mxu0 0
    %818 = vmatpush2.bf16.msra.mxu0 0
    %819 = vmatprep.mubr.bf16.mxu0 0
    %820 = vmatmul.mubr.bf16.gmra.mxu0 %v642
    %v821 = vpop.f32.mrf.mxu0
    %v822 = vadd.f32 %v647, %v821
    %v823 = vpop.f32.mrf.mxu0
    %v824 = vadd.f32 %v651, %v823
    %v825 = vpop.f32.mrf.mxu0
    %v826 = vadd.f32 %v647, %v825
    %v827 = vpop.f32.mrf.mxu0
    %v828 = vadd.f32 %v651, %v827
    %829 = vdwg.mxu0
    %830 = vmatprep.subr.bf16.mxu0 0
    %831 = vmatpush1.bf16.msra.mxu0 %v762
    %832 = vmatprep.subr.bf16.mxu0 0
    %833 = vmatpush1.bf16.msra.mxu0 %v759
    %834 = vmatprep.subr.bf16.mxu0 0
    %835 = vmatpush1.bf16.msra.mxu0 %v756
    %836 = vmatprep.subr.bf16.mxu0 0
    %837 = vmatpush1.bf16.msra.mxu0 %v753
    %838 = vmatprep.subr.bf16.mxu0 0
    %839 = vmatpush1.bf16.msra.mxu0 %v750
    %840 = vmatprep.subr.bf16.mxu0 0
    %841 = vmatpush1.bf16.msra.mxu0 %v747
    %842 = vmatprep.subr.bf16.mxu0 0
    %843 = vmatpush1.bf16.msra.mxu0 %v744
    %844 = vmatprep.subr.bf16.mxu0 0
    %845 = vmatpush1.bf16.msra.mxu0 %v741
    %846 = vmatprep.subr.bf16.mxu0 0
    %847 = vmatpush2.bf16.msra.mxu0 0
    %848 = vmatprep.subr.bf16.mxu0 0
    %849 = vmatpush2.bf16.msra.mxu0 0
    %850 = vmatprep.subr.bf16.mxu0 0
    %851 = vmatpush2.bf16.msra.mxu0 0
    %852 = vmatprep.subr.bf16.mxu0 0
    %853 = vmatpush2.bf16.msra.mxu0 0
    %854 = vmatprep.subr.bf16.mxu0 0
    %855 = vmatpush2.bf16.msra.mxu0 0
    %856 = vmatprep.subr.bf16.mxu0 0
    %857 = vmatpush2.bf16.msra.mxu0 0
    %858 = vmatprep.subr.bf16.mxu0 0
    %859 = vmatpush2.bf16.msra.mxu0 0
    %860 = vmatprep.subr.bf16.mxu0 0
    %861 = vmatpush2.bf16.msra.mxu0 0
    %862 = vmatprep.mubr.bf16.mxu0 0
    %863 = vmatmul.mubr.bf16.gmra.mxu0 %v642
    %v864 = vpop.f32.mrf.mxu0
    %v865 = vadd.f32 %v655, %v864
    %v866 = vpop.f32.mrf.mxu0
    %v867 = vpop.f32.mrf.mxu0
    %v868 = vadd.f32 %v655, %v867
    %v869 = vpop.f32.mrf.mxu0
    %870 = vdwg.mxu0
    %v871 = vmax.f32 %v822, %v824
    %v872 = vmax.f32 %v826, %v828
    %v873 = vmax.f32 %v871, %v865
    %v874 = vmax.f32 %v872, %v868
    %v875 = vpack.c.bf16 %v874, %v873
    %v876 = vld [vmem:[#allocation6] sm:$0xf]
    %v877 = vld [vmem:[#allocation6 + $0x4] sm:$0xf]
    %v878 = vld [vmem:[#allocation6 + $0x8] sm:$0xf]
    %v879 = vld [vmem:[#allocation6 + $0xc] sm:$0xf]
    %v880 = vld [vmem:[#allocation6 + $0x10] sm:$0xf]
    %v881 = vld [vmem:[#allocation6 + $0x14] sm:$0xf]
    %v882 = vld [vmem:[#allocation6 + $0x18] sm:$0xf]
    %v883 = vld [vmem:[#allocation6 + $0x1c] sm:$0xf]
    %v884 = vld [vmem:[#allocation6 + $0x20] sm:$0xf]
    %v885 = vld [vmem:[#allocation6 + $0x24] sm:$0xf]
    %v886 = vld [vmem:[#allocation6 + $0x28] sm:$0xf]
    %v887 = vld [vmem:[#allocation6 + $0x2c] sm:$0xf]
    %v888 = vld [vmem:[#allocation6 + $0x30] sm:$0xf]
    %v889 = vld [vmem:[#allocation6 + $0x34] sm:$0xf]
    %v890 = vld [vmem:[#allocation6 + $0x38] sm:$0xf]
    %v891 = vld [vmem:[#allocation6 + $0x3c] sm:$0xf]
    %v892 = vld [vmem:[%s6] sm:$0x1]
    %v894 = vlaneseq
    %v895 = vshrl.u32 %v894, 7
    %v896 = vsub.s32 0, %v895
    %v897 = vrot.slane %v892, %v896
    %v915 = vunpack.c.l.b16 %v876
    %v916 = vunpack.c.l.b16 %v877
    %v917 = vunpack.c.l.b16 %v878
    %v918 = vunpack.c.l.b16 %v879
    %v919 = vunpack.c.l.b16 %v880
    %v920 = vunpack.c.l.b16 %v881
    %v921 = vunpack.c.l.b16 %v882
    %v922 = vunpack.c.l.b16 %v883
    %v923 = vunpack.c.l.b16 %v884
    %v924 = vunpack.c.l.b16 %v885
    %v925 = vunpack.c.l.b16 %v886
    %v926 = vunpack.c.l.b16 %v887
    %v927 = vunpack.c.l.b16 %v888
    %v928 = vunpack.c.l.b16 %v889
    %v929 = vunpack.c.l.b16 %v890
    %v930 = vunpack.c.l.b16 %v891
    %v931 = vpack.c.b16 %v916, %v915
    %v932 = vpack.c.b16 %v918, %v917
    %v933 = vpack.c.b16 %v920, %v919
    %v934 = vpack.c.b16 %v922, %v921
    %v935 = vpack.c.b16 %v924, %v923
    %v936 = vpack.c.b16 %v926, %v925
    %v937 = vpack.c.b16 %v928, %v927
    %v938 = vpack.c.b16 %v930, %v929
    %947 = vmatprep.subr.bf16.mxu0 0
    %948 = vmatpush1.bf16.msra.mxu0 %v938
    %949 = vmatprep.subr.bf16.mxu0 0
    %950 = vmatpush1.bf16.msra.mxu0 %v937
    %951 = vmatprep.subr.bf16.mxu0 0
    %952 = vmatpush1.bf16.msra.mxu0 %v936
    %953 = vmatprep.subr.bf16.mxu0 0
    %954 = vmatpush1.bf16.msra.mxu0 %v935
    %955 = vmatprep.subr.bf16.mxu0 0
    %956 = vmatpush1.bf16.msra.mxu0 %v934
    %957 = vmatprep.subr.bf16.mxu0 0
    %958 = vmatpush1.bf16.msra.mxu0 %v933
    %959 = vmatprep.subr.bf16.mxu0 0
    %960 = vmatpush1.bf16.msra.mxu0 %v932
    %961 = vmatprep.subr.bf16.mxu0 0
    %962 = vmatpush1.bf16.msra.mxu0 %v931
    %963 = vmatprep.subr.bf16.mxu0 0
    %964 = vmatpush2.bf16.msra.mxu0 0
    %965 = vmatprep.subr.bf16.mxu0 0
    %966 = vmatpush2.bf16.msra.mxu0 0
    %967 = vmatprep.subr.bf16.mxu0 0
    %968 = vmatpush2.bf16.msra.mxu0 0
    %969 = vmatprep.subr.bf16.mxu0 0
    %970 = vmatpush2.bf16.msra.mxu0 0
    %971 = vmatprep.subr.bf16.mxu0 0
    %972 = vmatpush2.bf16.msra.mxu0 0
    %973 = vmatprep.subr.bf16.mxu0 0
    %974 = vmatpush2.bf16.msra.mxu0 0
    %975 = vmatprep.subr.bf16.mxu0 0
    %976 = vmatpush2.bf16.msra.mxu0 0
    %977 = vmatprep.subr.bf16.mxu0 0
    %978 = vmatpush2.bf16.msra.mxu0 0
    %979 = vmatprep.mubr.bf16.mxu0 0
    %980 = vmatmul.mubr.bf16.gmra.mxu0 %v875
    %v981 = vpop.f32.mrf.mxu0
    %v982 = vadd.f32 %v897, %v981
    %v983 = vpop.f32.mrf.mxu0
    %v984 = vpop.f32.mrf.mxu0
    %v985 = vadd.f32 %v897, %v984
    %v986 = vpop.f32.mrf.mxu0
    %987 = vdwg.mxu0
    %988 = vst [vmem:[%s7] sm:$0xff] %v982
    %989 = vst [vmem:[%s7 + $0x8] sm:$0xff] %v985
    // Predicated region
    $region42: #{maxout_forward_pallas.1} parent=1 // pred_check
      _
    $region43: #{maxout_forward_pallas.1} parent=1 // pred_check_branch
      %991 = sbr.rel (0) target = $region45
    $region44: #{maxout_forward_pallas.1} parent=1 // pred_region
      _
    $region45: #{maxout_forward_pallas.1} parent=1 // pred_fallthru
      _
    // Predicated region
    $region46: #{maxout_forward_pallas.1} parent=1 // pred_check
      _
    $region47: #{maxout_forward_pallas.1} parent=1 // pred_check_branch
      %993 = sbr.rel (0) target = $region49
    $region48: #{maxout_forward_pallas.1} parent=1 // pred_region
      _
    $region49: #{maxout_forward_pallas.1} parent=1 // pred_fallthru
      _
    %994 = vsyncpa [#allocation3], 1
    %995 = vsyncpa [#allocation5], 1

</llo_original>
